<compile_context>
chip_gen: v6e
topology: v6e:2x2x1
jax: 0.10.0
libtpu: 0.0.40
codegen_flags: <defaults>
</compile_context>

<pallas_src>
import jax
import jax.numpy as jnp
from jax.experimental import pallas as pl
from jax.experimental.pallas import tpu as pltpu

BN_EPS = 1e-5
_VMEM_LIMIT = 32 * 1024 * 1024  # safe on v5e/v6e (128 MiB) and v7x (64 MiB physical)


def _round_up(a, b):
    return ((a + b - 1) // b) * b


# ---------------------------------------------------------------------------
# Pass 1: ReLU -> 1x1 conv (matmul over channels) + per-channel sum / sumsq.
# ---------------------------------------------------------------------------
def _conv_stats_kernel(x_ref, w_ref, y_ref, sum_ref, ssq_ref):
    """x_ref: (C_in, TM), w_ref: (C_out, C_in), y_ref: (C_out, TM),
    sum_ref/ssq_ref: (C_out, 1) resident accumulators across the M grid axis."""

    @pl.when(pl.program_id(0) == 0)
    def _():
        sum_ref[...] = jnp.zeros_like(sum_ref)
        ssq_ref[...] = jnp.zeros_like(ssq_ref)

    x = jnp.maximum(x_ref[...], 0.0)                                  # ReLU (VPU)
    y = jnp.dot(w_ref[...], x, preferred_element_type=jnp.float32)    # 1x1 conv (MXU)
    y_ref[...] = y
    # One sweep over y: sum and sum-of-squares (var = E[y^2] - mean^2), f32 accum.
    sum_ref[...] += jnp.sum(y, axis=1, keepdims=True)
    ssq_ref[...] += jnp.sum(y * y, axis=1, keepdims=True)


# ---------------------------------------------------------------------------
# Pass 2: apply folded BatchNorm: o = y * scale + shift (per-channel).
# ---------------------------------------------------------------------------
def _bn_apply_kernel(y_ref, scale_ref, shift_ref, o_ref):
    o_ref[...] = y_ref[...] * scale_ref[...] + shift_ref[...]


def relu_conv_bn(x_nchw, w_oihw, gamma, beta, *, use_bf16_matmul=False):
    """ReLU -> Conv2d(1x1, stride=1, bias=False) -> BatchNorm2d (training batch stats).

    x_nchw:  (N, C_in, H, W)
    w_oihw:  (C_out, C_in, 1, 1)   (PyTorch conv weight layout)
    gamma:   (C_out,), beta: (C_out,)
    returns: (N, C_out, H, W) f32

    use_bf16_matmul: on v6e/v7x the MXU is bf16-native; casting x/w to bf16 halves
    HBM/VMEM traffic for the conv while BN math stays f32.  Default False to keep
    bit-fidelity with the f32 PyTorch reference.
    """
    N, Cin, H, W = x_nchw.shape
    Cout = w_oihw.shape[0]
    M = N * H * W

    # Lane-dense slab: channels on sublanes, M = N*H*W on the lane (last) dim.
    x_cm = jnp.transpose(x_nchw, (1, 0, 2, 3)).reshape(Cin, M)
    w_oc = w_oihw.reshape(Cout, Cin)

    # M-tile: multiple of 128 lanes, ~2048 f32 lanes per step (HBM-roofline sweet
    # spot), sized well inside the v7x 64 MiB VMEM budget even for large C.
    TM = min(2048, _round_up(M, 128))
    M_pad = _round_up(M, TM)
    if M_pad != M:
        # Zero padding: relu(0)=0 -> y=0 in the pad, contributes 0 to sum & sumsq,
        # so stats divided by the *real* M stay exact.
        x_cm = jnp.pad(x_cm, ((0, 0), (0, M_pad - M)))
    grid = (M_pad // TM,)

    in_dtype = jnp.bfloat16 if use_bf16_matmul else jnp.float32
    x_cm = x_cm.astype(in_dtype)
    w_oc = w_oc.astype(in_dtype)

    # ---- Pass 1: conv + stats (reduction axis -> "arbitrary", accumulator output).
    y, ysum, yssq = pl.pallas_call(
        _conv_stats_kernel,
        out_shape=(
            jax.ShapeDtypeStruct((Cout, M_pad), jnp.float32),
            jax.ShapeDtypeStruct((Cout, 1), jnp.float32),
            jax.ShapeDtypeStruct((Cout, 1), jnp.float32),
        ),
        grid=grid,
        in_specs=[
            pl.BlockSpec((Cin, TM), lambda i: (0, i)),
            pl.BlockSpec((Cout, Cin), lambda i: (0, 0)),
        ],
        out_specs=(
            pl.BlockSpec((Cout, TM), lambda i: (0, i)),
            pl.BlockSpec((Cout, 1), lambda i: (0, 0)),
            pl.BlockSpec((Cout, 1), lambda i: (0, 0)),
        ),
        compiler_params=pltpu.CompilerParams(
            dimension_semantics=("arbitrary",),
            vmem_limit_bytes=_VMEM_LIMIT,
        ),
    )(x_cm, w_oc)

    # ---- Fold BN (training-mode batch statistics) into per-channel scale/shift.
    # All in f32 to avoid cancellation issues with the E[y^2] - mean^2 form.
    mean = ysum / M
    var = jnp.maximum(yssq / M - mean * mean, 0.0)          # biased variance, as torch
    scale = gamma.reshape(Cout, 1).astype(jnp.float32) * jax.lax.rsqrt(var + BN_EPS)
    shift = beta.reshape(Cout, 1).astype(jnp.float32) - mean * scale
    # TODO(synk): BatchNorm running_mean/running_var buffers are not updated
    # (torch training-time side effect); forward output is unaffected.

    # ---- Pass 2: normalize (independent tiles -> "parallel", megacore on v7x).
    out_cm = pl.pallas_call(
        _bn_apply_kernel,
        out_shape=jax.ShapeDtypeStruct((Cout, M_pad), jnp.float32),
        grid=grid,
        in_specs=[
            pl.BlockSpec((Cout, TM), lambda i: (0, i)),
            pl.BlockSpec((Cout, 1), lambda i: (0, 0)),
            pl.BlockSpec((Cout, 1), lambda i: (0, 0)),
        ],
        out_specs=pl.BlockSpec((Cout, TM), lambda i: (0, i)),
        compiler_params=pltpu.CompilerParams(
            dimension_semantics=("parallel",),
            vmem_limit_bytes=_VMEM_LIMIT,
        ),
    )(y, scale, shift)

    out_cm = out_cm[:, :M]
    return jnp.transpose(out_cm.reshape(Cout, N, H, W), (1, 0, 2, 3))


def make_cell_params(key, C_prev_prev, C_prev, C):
    """Deterministic parameter init matching Cell(C_prev_prev, C_prev, C) shapes."""
    k0, k1 = jax.random.split(key, 2)
    return {
        # preprocess0 = ReLUConvBN(C_prev_prev, C)
        "w0": 0.1 * jax.random.normal(k0, (C, C_prev_prev, 1, 1), jnp.float32),
        "gamma0": jnp.ones((C,), jnp.float32),
        "beta0": jnp.zeros((C,), jnp.float32),
        # preprocess1 = ReLUConvBN(C_prev, C) -- present for state parity; its
        # output is dead w.r.t. the Cell output with the default genotype.
        "w1": 0.1 * jax.random.normal(k1, (C, C_prev, 1, 1), jnp.float32),
        "gamma1": jnp.ones((C,), jnp.float32),
        "beta1": jnp.zeros((C,), jnp.float32),
    }


def cell_forward(params, s0, s1, drop_prob=0.0):
    """Cell.forward with reduction=False, reduction_prev=False.

    _indices = (1, 0), both ops are skip_connect (Identity), _concat = range(1),
    so the returned tensor is exactly preprocess0(s0).  preprocess1(s1), the add
    and the concat are dead w.r.t. the output and therefore not computed
    (perf feedback: removes an entire extra pallas_call + HBM round trip).
    drop_prob is unused (no drop_path on Identity ops).
    """
    del s1, drop_prob
    return relu_conv_bn(s0, params["w0"], params["gamma0"], params["beta0"])


if __name__ == "__main__":
    # Small shapes consistent with the module: NCHW inputs.
    N, C_prev_prev, C_prev, C, H, W = 2, 4, 4, 8, 16, 16

    key = jax.random.PRNGKey(0)
    kp, ks0, ks1 = jax.random.split(key, 3)

    params = make_cell_params(kp, C_prev_prev, C_prev, C)
    s0 = jax.random.normal(ks0, (N, C_prev_prev, H, W), jnp.float32)
    s1 = jax.random.normal(ks1, (N, C_prev, H, W), jnp.float32)

    out = cell_forward(params, s0, s1, drop_prob=0.0)
    out = jax.block_until_ready(out)

    assert out.shape == (N, C, H, W), out.shape
    assert bool(jnp.all(jnp.isfinite(out)))
    print("KERNEL_OK")
</pallas_src>

<mosaic_0001>
module attributes {stable_mosaic.version = 11 : i64} {
  func.func @_conv_stats_kernel(%arg0: i32, %arg1: memref<4x512xf32, #tpu.memory_space<vmem>>, %arg2: memref<8x4xf32, #tpu.memory_space<vmem>>, %arg3: memref<8x512xf32, #tpu.memory_space<vmem>>, %arg4: memref<8x1xf32, #tpu.memory_space<vmem>>, %arg5: memref<8x1xf32, #tpu.memory_space<vmem>>) attributes {dimension_semantics = [#tpu.dimension_semantics<arbitrary>], iteration_bounds = array<i64: 1>, scalar_prefetch = 0 : i64, scratch_operands = 0 : i64, tpu.core_type = #tpu.core_type<tc>, window_params = [{transform_indices = @transform_0, window_bounds = array<i64: 4, 512>}, {pipeline_mode = #tpu.pipeline_mode<synchronous>, transform_indices = @transform_1, window_bounds = array<i64: 8, 4>}, {transform_indices = @transform_2, window_bounds = array<i64: 8, 512>}, {pipeline_mode = #tpu.pipeline_mode<synchronous>, transform_indices = @transform_3, window_bounds = array<i64: 8, 1>}, {pipeline_mode = #tpu.pipeline_mode<synchronous>, transform_indices = @transform_4, window_bounds = array<i64: 8, 1>}]} {
    %c0_i32 = arith.constant 0 : i32
    %0 = arith.cmpi eq, %arg0, %c0_i32 : i32
    %1 = arith.extui %0 : i1 to i32
    %c0_i32_0 = arith.constant 0 : i32
    %2 = arith.cmpi ne, %1, %c0_i32_0 : i32
    scf.if %2 {
      %cst_17 = arith.constant 0.000000e+00 : f32
      %20 = vector.broadcast %cst_17 : f32 to vector<8x1xf32>
      %c0_18 = arith.constant 0 : index
      %c0_19 = arith.constant 0 : index
      %21 = vector.load %arg4[%c0_18, %c0_19] : memref<8x1xf32, #tpu.memory_space<vmem>>, vector<8x1xf32>
      tpu.vector_store %arg4[%c0_18, %c0_19], %20 {strides = array<i32>} : memref<8x1xf32, #tpu.memory_space<vmem>>, vector<8x1xf32>,
      %cst_20 = arith.constant 0.000000e+00 : f32
      %22 = vector.broadcast %cst_20 : f32 to vector<8x1xf32>
      %c0_21 = arith.constant 0 : index
      %c0_22 = arith.constant 0 : index
      %23 = vector.load %arg5[%c0_21, %c0_22] : memref<8x1xf32, #tpu.memory_space<vmem>>, vector<8x1xf32>
      tpu.vector_store %arg5[%c0_21, %c0_22], %22 {strides = array<i32>} : memref<8x1xf32, #tpu.memory_space<vmem>>, vector<8x1xf32>,
    } else {
    }
    %c0 = arith.constant 0 : index
    %c0_1 = arith.constant 0 : index
    %3 = vector.load %arg1[%c0, %c0_1] : memref<4x512xf32, #tpu.memory_space<vmem>>, vector<4x512xf32>
    %cst = arith.constant 0.000000e+00 : f32
    %4 = vector.broadcast %cst : f32 to vector<4x512xf32>
    %5 = arith.maximumf %3, %4 : vector<4x512xf32>
    %c0_2 = arith.constant 0 : index
    %c0_3 = arith.constant 0 : index
    %6 = vector.load %arg2[%c0_2, %c0_3] : memref<8x4xf32, #tpu.memory_space<vmem>>, vector<8x4xf32>
    %cst_4 = arith.constant dense<0.000000e+00> : vector<8x512xf32>
    %7 = tpu.matmul %6, %5, %cst_4 {dimension_numbers = #tpu.dot_dimension_numbers<[1], [0], [0], [1], [0, 0, 1, 1], [], []>} : vector<8x4xf32>, vector<4x512xf32>, vector<8x512xf32> -> vector<8x512xf32>
    %c0_5 = arith.constant 0 : index
    %c0_6 = arith.constant 0 : index
    %8 = vector.load %arg3[%c0_5, %c0_6] : memref<8x512xf32, #tpu.memory_space<vmem>>, vector<8x512xf32>
    tpu.vector_store %arg3[%c0_5, %c0_6], %7 {strides = array<i32>} : memref<8x512xf32, #tpu.memory_space<vmem>>, vector<8x512xf32>,
    %c0_7 = arith.constant 0 : index
    %c0_8 = arith.constant 0 : index
    %9 = vector.load %arg4[%c0_7, %c0_8] : memref<8x1xf32, #tpu.memory_space<vmem>>, vector<8x1xf32>
    %cst_9 = arith.constant dense<0.000000e+00> : vector<8xf32>
    %10 = vector.multi_reduction <add>, %7, %cst_9 [1] : vector<8x512xf32> to vector<8xf32>
    %11 = vector.shape_cast %10 : vector<8xf32> to vector<8x1xf32>
    %12 = arith.addf %9, %11 : vector<8x1xf32>
    %c0_10 = arith.constant 0 : index
    %c0_11 = arith.constant 0 : index
    %13 = vector.load %arg4[%c0_10, %c0_11] : memref<8x1xf32, #tpu.memory_space<vmem>>, vector<8x1xf32>
    tpu.vector_store %arg4[%c0_10, %c0_11], %12 {strides = array<i32>} : memref<8x1xf32, #tpu.memory_space<vmem>>, vector<8x1xf32>,
    %c0_12 = arith.constant 0 : index
    %c0_13 = arith.constant 0 : index
    %14 = vector.load %arg5[%c0_12, %c0_13] : memref<8x1xf32, #tpu.memory_space<vmem>>, vector<8x1xf32>
    %15 = arith.mulf %7, %7 : vector<8x512xf32>
    %cst_14 = arith.constant dense<0.000000e+00> : vector<8xf32>
    %16 = vector.multi_reduction <add>, %15, %cst_14 [1] : vector<8x512xf32> to vector<8xf32>
    %17 = vector.shape_cast %16 : vector<8xf32> to vector<8x1xf32>
    %18 = arith.addf %14, %17 : vector<8x1xf32>
    %c0_15 = arith.constant 0 : index
    %c0_16 = arith.constant 0 : index
    %19 = vector.load %arg5[%c0_15, %c0_16] : memref<8x1xf32, #tpu.memory_space<vmem>>, vector<8x1xf32>
    tpu.vector_store %arg5[%c0_15, %c0_16], %18 {strides = array<i32>} : memref<8x1xf32, #tpu.memory_space<vmem>>, vector<8x1xf32>,
    return
  }
  func.func @transform_0(%arg0: i32) -> (i32, i32) {
    %c0_i32 = arith.constant 0 : i32
    %c0_i32_0 = arith.constant 0 : i32
    return %c0_i32, %arg0 : i32, i32
  }
  func.func @transform_1(%arg0: i32) -> (i32, i32) {
    %c0_i32 = arith.constant 0 : i32
    %c0_i32_0 = arith.constant 0 : i32
    %c0_i32_1 = arith.constant 0 : i32
    return %c0_i32, %c0_i32_0 : i32, i32
  }
  func.func @transform_2(%arg0: i32) -> (i32, i32) {
    %c0_i32 = arith.constant 0 : i32
    %c0_i32_0 = arith.constant 0 : i32
    return %c0_i32, %arg0 : i32, i32
  }
  func.func @transform_3(%arg0: i32) -> (i32, i32) {
    %c0_i32 = arith.constant 0 : i32
    %c0_i32_0 = arith.constant 0 : i32
    %c0_i32_1 = arith.constant 0 : i32
    return %c0_i32, %c0_i32_0 : i32, i32
  }
  func.func @transform_4(%arg0: i32) -> (i32, i32) {
    %c0_i32 = arith.constant 0 : i32
    %c0_i32_0 = arith.constant 0 : i32
    %c0_i32_1 = arith.constant 0 : i32
    return %c0_i32, %c0_i32_0 : i32, i32
  }
}

</mosaic_0001>

<llo_original>
// kernel: tpu_custom_call.1
$region0: #{tpu_custom_call.1}
  #allocation0 [shape = 'u32[]', space=smem, size = 0x4, offset = 0x4, fixed_abs, tag = 'smem constant byte address 0x4 - core index']
  #allocation1 [shape = 'u32[144,128]{1,0:T(1,128)}', space=vmem, size = 0x12000, scoped, tag = 'internal scratch']
  %s0 = inlined_call_operand.hbm [shape: f32[4,512], index: 0, kind: input, shape index: {}]
  %s1 = inlined_call_operand.vmem [shape: f32[8,4], index: 1, kind: input, shape index: {}]
  %s2 = inlined_call_operand.hbm [shape: f32[8,512], index: 2, kind: output, shape index: {0}]
  %s3 = inlined_call_operand.vmem [shape: f32[8,1], index: 3, kind: output, shape index: {1}]
  %s4 = inlined_call_operand.vmem [shape: f32[8,1], index: 4, kind: output, shape index: {2}]
  %5 = xla_tuple %s2, %s3, %s4
  %s6 = sld [smem:[#allocation0]]
  $region42: #{tpu_custom_call.1} parent=0
    _
  %s8 = ssub.s32 1, %s6
  %s9 = scalar_select 0, %s8, %s6
  $region1: #{tpu_custom_call.1} parent=0
    #allocation2 [shape = 'u8[8192]{0}', space=vmem, size = 0x2000, scoped, tag = 'input window, operand 0, single buffered']
    #allocation3 [shape = 's32[1]{0}', space=sflag, size = 0x4, scoped, tag = 'scoped memory for tpu_custom_call.1']
    #allocation4 [shape = 's32[1]{0}', space=sflag, size = 0x4, scoped, tag = 'scoped memory for tpu_custom_call.1']
    #allocation5 [shape = 'u8[16384]{0}', space=vmem, size = 0x4000, scoped, tag = 'output window, operand 0, single buffered']
    %10 = vsyncpa [#allocation3], 0
    %11 = vsyncpa [#allocation4], 0
    // Predicated region
    $region2: #{tpu_custom_call.1} parent=1 // pred_check
      _
    $region3: #{tpu_custom_call.1} parent=1 // pred_check_branch
      %13 = sbr.rel (0) target = $region5
    $region4: #{tpu_custom_call.1} parent=1 // pred_region
      %s15 = ssub.s32 256, 256
      %16 = vsyncadd [#allocation3], %s15
      %s18 = sshll.u32 [#allocation2], 4
      %s19 = int_to_ptr.vmem [resolvable:$true] %s18
      %21 = dma.hbm_to_vmem [thread:$0]  %s0, 256, %s19, [#allocation3]
    $region5: #{tpu_custom_call.1} parent=1 // pred_fallthru
      _
    // Predicated region
    $region6: #{tpu_custom_call.1} parent=1 // pred_check
      _
    $region7: #{tpu_custom_call.1} parent=1 // pred_check_branch
      %23 = sbr.rel (0) target = $region9
    $region8: #{tpu_custom_call.1} parent=1 // pred_region
      _
    $region9: #{tpu_custom_call.1} parent=1 // pred_fallthru
      _
    // Predicated region
    $region10: #{tpu_custom_call.1} parent=1 // pred_check
      _
    $region11: #{tpu_custom_call.1} parent=1 // pred_check_branch
      %25 = sbr.rel (0) target = $region13
    $region12: #{tpu_custom_call.1} parent=1 // pred_region
      %26 = dma.done [#allocation3], 256
    $region13: #{tpu_custom_call.1} parent=1 // pred_fallthru
      _
    %p27 = scmp.eq.s32.totalorder 0, 0
    // Predicated region
    $region14: #{tpu_custom_call.1} parent=1 // pred_check
      %p28 = pneg %p27
    $region15: #{tpu_custom_call.1} parent=1 // pred_check_branch
      %30 = sbr.rel (%p28) target = $region17
    $region16: #{tpu_custom_call.1} parent=1 // pred_region
      %vm31 = vcmask 7168
      %32 = vst.msk [vmem:[%s3] sm:$0xff] %vm31, 0.0
      %33 = vst.msk [vmem:[%s4] sm:$0xff] %vm31, 0.0
    $region17: #{tpu_custom_call.1} parent=1 // pred_fallthru
      _
    %v34 = vld [vmem:[#allocation2] sm:$0xff]
    %v35 = vld [vmem:[#allocation2 + $0x8] sm:$0xff]
    %v36 = vmax.f32 %v34, 0.0
    %v37 = vmax.f32 %v35, 0.0
    %v38 = vld [vmem:[%s1] sm:$0xff]
    %v41 = vcombine.high %v36, %v36
    %v42 = vcombine.high %v37, %v37
    %vm43 = vcmask 31744
    %v45 = vsel %vm43, %v38, 0
    %vm47 = vcmask 1043456
    %v48 = vsel %vm47, %v36, 0
    %v50 = vsel %vm47, %v41, 0
    %v52 = vsel %vm47, %v37, 0
    %v54 = vsel %vm47, %v42, 0
    %56 = vmatprep.subr.mxu0 0.0
    %57 = vmatpush1.msra.mxu0 0.0
    %58 = vmatprep.subr.mxu0 0.0
    %59 = vmatpush1.msra.mxu0 0.0
    %60 = vmatprep.subr.mxu0 0.0
    %61 = vmatpush1.msra.mxu0 0.0
    %62 = vmatprep.subr.mxu0 0.0
    %63 = vmatpush1.msra.mxu0 0.0
    %64 = vmatprep.subr.mxu0 0.0
    %65 = vmatpush1.msra.mxu0 0.0
    %66 = vmatprep.subr.mxu0 0.0
    %67 = vmatpush1.msra.mxu0 0.0
    %68 = vmatprep.subr.mxu0 0.0
    %69 = vmatpush1.msra.mxu0 0.0
    %70 = vmatprep.subr.mxu0 0.0
    %71 = vmatpush1.msra.mxu0 0.0
    %72 = vmatprep.subr.mxu0 0.0
    %73 = vmatpush1.msra.mxu0 0.0
    %74 = vmatprep.subr.mxu0 0.0
    %75 = vmatpush1.msra.mxu0 0.0
    %76 = vmatprep.subr.mxu0 0.0
    %77 = vmatpush1.msra.mxu0 0.0
    %78 = vmatprep.subr.mxu0 0.0
    %79 = vmatpush1.msra.mxu0 0.0
    %80 = vmatprep.subr.mxu0 0.0
    %81 = vmatpush1.msra.mxu0 0.0
    %82 = vmatprep.subr.mxu0 0.0
    %83 = vmatpush1.msra.mxu0 0.0
    %84 = vmatprep.subr.mxu0 0.0
    %85 = vmatpush1.msra.mxu0 0.0
    %86 = vmatprep.subr.mxu0 %v50
    %87 = vmatpush1.msra.mxu0 %v48
    %88 = vmatprep.subr.mxu0 0.0
    %89 = vmatpush2.msra.mxu0 0.0
    %90 = vmatprep.subr.mxu0 0.0
    %91 = vmatpush2.msra.mxu0 0.0
    %92 = vmatprep.subr.mxu0 0.0
    %93 = vmatpush2.msra.mxu0 0.0
    %94 = vmatprep.subr.mxu0 0.0
    %95 = vmatpush2.msra.mxu0 0.0
    %96 = vmatprep.subr.mxu0 0.0
    %97 = vmatpush2.msra.mxu0 0.0
    %98 = vmatprep.subr.mxu0 0.0
    %99 = vmatpush2.msra.mxu0 0.0
    %100 = vmatprep.subr.mxu0 0.0
    %101 = vmatpush2.msra.mxu0 0.0
    %102 = vmatprep.subr.mxu0 0.0
    %103 = vmatpush2.msra.mxu0 0.0
    %104 = vmatprep.subr.mxu0 0.0
    %105 = vmatpush2.msra.mxu0 0.0
    %106 = vmatprep.subr.mxu0 0.0
    %107 = vmatpush2.msra.mxu0 0.0
    %108 = vmatprep.subr.mxu0 0.0
    %109 = vmatpush2.msra.mxu0 0.0
    %110 = vmatprep.subr.mxu0 0.0
    %111 = vmatpush2.msra.mxu0 0.0
    %112 = vmatprep.subr.mxu0 0.0
    %113 = vmatpush2.msra.mxu0 0.0
    %114 = vmatprep.subr.mxu0 0.0
    %115 = vmatpush2.msra.mxu0 0.0
    %116 = vmatprep.subr.mxu0 0.0
    %117 = vmatpush2.msra.mxu0 0.0
    %118 = vmatprep.subr.mxu0 0.0
    %119 = vmatpush2.msra.mxu0 0.0
    %120 = vmatprep.mubr.f32.mxu0 0.0
    %121 = vmatmul.mubr.f32.gmra.mxu0 %v45
    %v122 = vpop.f32.mrf.mxu0
    %v123 = vadd.f32 0.0, %v122
    %v124 = vpop.f32.mrf.mxu0
    %v125 = vadd.f32 0.0, %v124
    %126 = vdwg.mxu0
    %127 = vmatprep.subr.mxu0 0.0
    %128 = vmatpush1.msra.mxu0 0.0
    %129 = vmatprep.subr.mxu0 0.0
    %130 = vmatpush1.msra.mxu0 0.0
    %131 = vmatprep.subr.mxu0 0.0
    %132 = vmatpush1.msra.mxu0 0.0
    %133 = vmatprep.subr.mxu0 0.0
    %134 = vmatpush1.msra.mxu0 0.0
    %135 = vmatprep.subr.mxu0 0.0
    %136 = vmatpush1.msra.mxu0 0.0
    %137 = vmatprep.subr.mxu0 0.0
    %138 = vmatpush1.msra.mxu0 0.0
    %139 = vmatprep.subr.mxu0 0.0
    %140 = vmatpush1.msra.mxu0 0.0
    %141 = vmatprep.subr.mxu0 0.0
    %142 = vmatpush1.msra.mxu0 0.0
    %143 = vmatprep.subr.mxu0 0.0
    %144 = vmatpush1.msra.mxu0 0.0
    %145 = vmatprep.subr.mxu0 0.0
    %146 = vmatpush1.msra.mxu0 0.0
    %147 = vmatprep.subr.mxu0 0.0
    %148 = vmatpush1.msra.mxu0 0.0
    %149 = vmatprep.subr.mxu0 0.0
    %150 = vmatpush1.msra.mxu0 0.0
    %151 = vmatprep.subr.mxu0 0.0
    %152 = vmatpush1.msra.mxu0 0.0
    %153 = vmatprep.subr.mxu0 0.0
    %154 = vmatpush1.msra.mxu0 0.0
    %155 = vmatprep.subr.mxu0 0.0
    %156 = vmatpush1.msra.mxu0 0.0
    %157 = vmatprep.subr.mxu0 %v54
    %158 = vmatpush1.msra.mxu0 %v52
    %159 = vmatprep.subr.mxu0 0.0
    %160 = vmatpush2.msra.mxu0 0.0
    %161 = vmatprep.subr.mxu0 0.0
    %162 = vmatpush2.msra.mxu0 0.0
    %163 = vmatprep.subr.mxu0 0.0
    %164 = vmatpush2.msra.mxu0 0.0
    %165 = vmatprep.subr.mxu0 0.0
    %166 = vmatpush2.msra.mxu0 0.0
    %167 = vmatprep.subr.mxu0 0.0
    %168 = vmatpush2.msra.mxu0 0.0
    %169 = vmatprep.subr.mxu0 0.0
    %170 = vmatpush2.msra.mxu0 0.0
    %171 = vmatprep.subr.mxu0 0.0
    %172 = vmatpush2.msra.mxu0 0.0
    %173 = vmatprep.subr.mxu0 0.0
    %174 = vmatpush2.msra.mxu0 0.0
    %175 = vmatprep.subr.mxu0 0.0
    %176 = vmatpush2.msra.mxu0 0.0
    %177 = vmatprep.subr.mxu0 0.0
    %178 = vmatpush2.msra.mxu0 0.0
    %179 = vmatprep.subr.mxu0 0.0
    %180 = vmatpush2.msra.mxu0 0.0
    %181 = vmatprep.subr.mxu0 0.0
    %182 = vmatpush2.msra.mxu0 0.0
    %183 = vmatprep.subr.mxu0 0.0
    %184 = vmatpush2.msra.mxu0 0.0
    %185 = vmatprep.subr.mxu0 0.0
    %186 = vmatpush2.msra.mxu0 0.0
    %187 = vmatprep.subr.mxu0 0.0
    %188 = vmatpush2.msra.mxu0 0.0
    %189 = vmatprep.subr.mxu0 0.0
    %190 = vmatpush2.msra.mxu0 0.0
    %191 = vmatprep.mubr.f32.mxu0 0.0
    %192 = vmatmul.mubr.f32.gmra.mxu0 %v45
    %v193 = vpop.f32.mrf.mxu0
    %v194 = vadd.f32 0.0, %v193
    %v195 = vpop.f32.mrf.mxu0
    %v196 = vadd.f32 0.0, %v195
    %197 = vdwg.mxu0
    %198 = vst [vmem:[#allocation5] sm:$0xff] %v123
    %199 = vst [vmem:[#allocation5 + $0x8] sm:$0xff] %v125
    %200 = vst [vmem:[#allocation5 + $0x10] sm:$0xff] %v194
    %201 = vst [vmem:[#allocation5 + $0x18] sm:$0xff] %v196
    %v202 = vld [vmem:[%s3] sm:$0xff]
    %v203 = vadd.f32 %v123, %v125
    %v204 = vadd.f32 %v203, %v194
    %v205 = vadd.f32 %v204, %v196
    %206 = vadd.xlane.f32.xlu0 %v205
    %v207 = vpop.xlane.xlu0 %206
    %v208 = vadd.f32 %v202, %v207
    %vm209 = vcmask 7168
    %210 = vst.msk [vmem:[%s3] sm:$0xff] %vm209, %v208
    %v211 = vld [vmem:[%s4] sm:$0xff]
    %v212 = vmul.f32 %v123, %v123
    %v213 = vmul.f32 %v125, %v125
    %v214 = vmul.f32 %v194, %v194
    %v215 = vmul.f32 %v196, %v196
    %v216 = vadd.f32 %v212, %v213
    %v217 = vadd.f32 %v216, %v214
    %v218 = vadd.f32 %v217, %v215
    %219 = vadd.xlane.f32.xlu0 %v218
    %v220 = vpop.xlane.xlu0 %219
    %v221 = vadd.f32 %v211, %v220
    %222 = vst.msk [vmem:[%s4] sm:$0xff] %vm209, %v221
    // Predicated region
    $region18: #{tpu_custom_call.1} parent=1 // pred_check
      _
    $region19: #{tpu_custom_call.1} parent=1 // pred_check_branch
      %224 = sbr.rel (0) target = $region21
    $region20: #{tpu_custom_call.1} parent=1 // pred_region
      %s226 = ssub.s32 512, 512
      %227 = vsyncadd [#allocation4], %s226
      %s229 = sshll.u32 [#allocation5], 4
      %s230 = int_to_ptr.vmem [resolvable:$true] %s229
      %232 = dma.vmem_to_hbm [thread:$0]  %s230, 512, %s2, [#allocation4]
    $region21: #{tpu_custom_call.1} parent=1 // pred_fallthru
      _
    // Predicated region
    $region22: #{tpu_custom_call.1} parent=1 // pred_check
      _
    $region23: #{tpu_custom_call.1} parent=1 // pred_check_branch
      %234 = sbr.rel (0) target = $region25
    $region24: #{tpu_custom_call.1} parent=1 // pred_region
      _
    $region25: #{tpu_custom_call.1} parent=1 // pred_fallthru
      _
    // Predicated region
    $region26: #{tpu_custom_call.1} parent=1 // pred_check
      _
    $region27: #{tpu_custom_call.1} parent=1 // pred_check_branch
      %236 = sbr.rel (0) target = $region29
    $region28: #{tpu_custom_call.1} parent=1 // pred_region
      _
    $region29: #{tpu_custom_call.1} parent=1 // pred_fallthru
      _
    // Predicated region
    $region30: #{tpu_custom_call.1} parent=1 // pred_check
      _
    $region31: #{tpu_custom_call.1} parent=1 // pred_check_branch
      %238 = sbr.rel (0) target = $region33
    $region32: #{tpu_custom_call.1} parent=1 // pred_region
      %239 = dma.done [#allocation4], 512
    $region33: #{tpu_custom_call.1} parent=1 // pred_fallthru
      _
    // Predicated region
    $region34: #{tpu_custom_call.1} parent=1 // pred_check
      _
    $region35: #{tpu_custom_call.1} parent=1 // pred_check_branch
      %241 = sbr.rel (0) target = $region37
    $region36: #{tpu_custom_call.1} parent=1 // pred_region
      _
    $region37: #{tpu_custom_call.1} parent=1 // pred_fallthru
      _
    // Predicated region
    $region38: #{tpu_custom_call.1} parent=1 // pred_check
      _
    $region39: #{tpu_custom_call.1} parent=1 // pred_check_branch
      %243 = sbr.rel (0) target = $region41
    $region40: #{tpu_custom_call.1} parent=1 // pred_region
      _
    $region41: #{tpu_custom_call.1} parent=1 // pred_fallthru
      _
    %244 = vsyncpa [#allocation3], 1
    %245 = vsyncpa [#allocation4], 1

</llo_original>
